<compile_context>
chip_gen: v6e
topology: v6e:2x2x1
jax: 0.10.0
libtpu: 0.0.40
codegen_flags: <defaults>
</compile_context>

<pallas_src>
import functools

import jax
import jax.numpy as jnp
from jax.experimental import pallas as pl
from jax.experimental.pallas import tpu as pltpu

_LANE = 128
_SUB = 8


def _round_up(x, a):
    return -(-x // a) * a


def _round_down(x, a):
    return (x // a) * a


def _intermediate_l1_kernel(*refs, weights, tile_rows, chunk, valid_rows,
                            needs_mask, sub_in_16):
    n = len(weights)
    pred_refs = refs[:n]
    tgt_ref = refs[n]
    out_ref = refs[n + 1]

    n_chunks = tile_rows // chunk
    tile_row0 = pl.program_id(0) * tile_rows
    if needs_mask:  # static: only emitted when R % tile_rows != 0
        base_rows = tile_row0 + jax.lax.broadcasted_iota(
            jnp.int32, (chunk, _LANE), 0)

    def chunk_sum(off):
        """Weighted |pred - tgt| over a (chunk,128) slice, folded to (8,128)."""
        t = tgt_ref[pl.ds(off, chunk), :]
        if not sub_in_16:
            t = t.astype(jnp.float32)
        s = None
        for i in range(n):
            p = pred_refs[i][pl.ds(off, chunk), :]
            if sub_in_16:
                # bf16/fp16 subtract+abs on the native-dtype VALU path,
                # cast to f32 only for the accumulate.
                d = jnp.abs(p - t).astype(jnp.float32)
            else:
                d = jnp.abs(p.astype(jnp.float32) - t)
            if weights[i] != 1.0:  # skip x1.0 multiplies (trace-time constant)
                d = weights[i] * d
            s = d if s is None else s + d
        if needs_mask:
            # Rows past the real slab hold stale VMEM garbage -> select away.
            s = jnp.where(base_rows + off < valid_rows, s, 0.0)
        # Fold (chunk,128) -> (8,128): pure vreg-vreg VPU adds (sublane groups
        # line up with (8,128) vreg tiles); no cross-lane reduce in-kernel.
        return s.reshape(chunk // _SUB, _SUB, _LANE).sum(axis=0)

    if n_chunks == 1:
        acc = chunk_sum(0)
    else:
        def body(c, acc):
            off = pl.multiple_of(c * chunk, chunk)
            return acc + chunk_sum(off)
        acc = jax.lax.fori_loop(0, n_chunks, body,
                                jnp.zeros((_SUB, _LANE), jnp.float32),
                                unroll=min(n_chunks, 4))

    out_ref[...] = acc.reshape(1, _SUB, _LANE)


def intermediate_l1_loss(predictions, target, gamma=1.0, *,
                         max_tile_rows=None, chunk_rows=None):
    """Pallas implementation of IntermediateL1Loss.forward.

    max_tile_rows / chunk_rows are optional tuning/testing overrides.
    """
    predictions = list(predictions)
    n = len(predictions)
    if n == 0:
        return jnp.zeros((), jnp.float32)

    m = int(target.size)  # true element count -> divisor of every mean
    for p in predictions:
        if int(p.size) != m:
            raise ValueError(
                "every prediction must have the same element count as target "
                "(per-prediction mean uses target.size as the divisor)")

    # ---- flatten to lane-dense (R,128) slabs; zero-copy when m % 128 == 0 ---
    pad = (-m) % _LANE
    if m + pad < _LANE * _SUB:          # tiny inputs: bump to one (8,128) tile
        pad = _LANE * _SUB - m
    # TODO(synk): truly zero-copy ragged path (m % 128 != 0) -- jnp.pad below
    # materialises one extra copy of each tensor before the kernel runs.

    def _as_slab(x):
        x = x.reshape(-1)               # native dtype, contiguous reshape
        if pad:
            # zero-pad pred AND target -> |0-0| = 0, cannot bias the sum.
            x = jnp.pad(x, (0, pad))
        return x.reshape(-1, _LANE)

    tgt2d = _as_slab(target)
    preds2d = [_as_slab(p) for p in predictions]
    R = tgt2d.shape[0]                  # >= 8, not necessarily a multiple of 8

    # ---- VMEM-capacity-aware tile sizing (no fixed row cap) -----------------
    try:
        vmem_cap = int(pltpu.get_tpu_info().vmem_capacity_bytes)
    except Exception:                   # pragma: no cover - conservative v7x
        vmem_cap = 64 * 1024 * 1024
    vmem_limit = max(32 * 1024 * 1024,
                     min((vmem_cap * 3) // 4, 96 * 1024 * 1024))
    budget = vmem_limit - 8 * 1024 * 1024   # headroom: temps, output, scratch

    bytes_per_row = (sum(p.dtype.itemsize for p in preds2d)
                     + tgt2d.dtype.itemsize) * _LANE
    tr_cap = max(_SUB, _round_down(budget // (2 * bytes_per_row), _SUB))
    tr = min(tr_cap, _round_down(R, _SUB))            # never exceed the slab
    if max_tile_rows is not None:
        tr = max(_SUB, min(tr, _round_down(int(max_tile_rows), _SUB)))
    # v7x megacore: once the slab is big enough, keep an even (>= 2) tile count
    # so the "parallel" grid axis balances across both TensorCores.
    if R >= 4096:
        nt = pl.cdiv(R, tr)
        nt = max(2, nt + (nt & 1))
        tr = min(tr, _round_up(pl.cdiv(R, nt), _SUB))
    if tr >= 512:                        # clean 256-row chunking for big tiles
        tr = _round_down(tr, 256)

    num_tiles = pl.cdiv(R, tr)
    needs_mask = (R % tr) != 0

    # ---- in-kernel chunk size (accumulator-bounded temporaries) -------------
    if chunk_rows is not None:
        chunk = int(chunk_rows)
        if chunk % _SUB or tr % chunk:
            raise ValueError("chunk_rows must be a multiple of 8 dividing the "
                             "tile rows")
    else:
        chunk = next(c for c in (256, 128, 64, 32, 16, 8) if tr % c == 0)

    # 16-bit native subtract/abs only when every input shares a 16-bit dtype.
    dtypes = {p.dtype for p in preds2d} | {tgt2d.dtype}
    sub_in_16 = (len(dtypes) == 1 and
                 next(iter(dtypes)) in (jnp.bfloat16, jnp.float16))

    # gamma**(N-1-i) baked in as compile-time constants.
    weights = tuple(float(gamma) ** (n - i - 1) for i in range(n))

    kernel = functools.partial(
        _intermediate_l1_kernel,
        weights=weights, tile_rows=tr, chunk=chunk, valid_rows=R,
        needs_mask=needs_mask, sub_in_16=sub_in_16)

    block = pl.BlockSpec((tr, _LANE), lambda r: (r, 0))

    partials = pl.pallas_call(
        kernel,
        out_shape=jax.ShapeDtypeStruct((num_tiles, _SUB, _LANE), jnp.float32),
        grid=(num_tiles,),
        in_specs=[block] * (n + 1),                 # n predictions + target
        out_specs=pl.BlockSpec((1, _SUB, _LANE), lambda r: (r, 0, 0)),
        compiler_params=pltpu.CompilerParams(
            dimension_semantics=("parallel",),      # no carry -> megacore OK
            vmem_limit_bytes=vmem_limit),
    )(*preds2d, tgt2d)

    # Single cross-lane reduce + the mean's 1/m on the tiny partial slab.
    return jnp.sum(partials) / m


def _reference(predictions, target, gamma=1.0):
    n = len(predictions)
    loss = 0.0
    for i in range(n):
        w = gamma ** (n - i - 1)
        loss += w * jnp.mean(jnp.abs(predictions[i].astype(jnp.float32) -
                                     target.astype(jnp.float32)))
    return loss


if __name__ == "__main__":
    gamma = 0.8
    n_preds = 3

    # Case 1: aligned element count (zero-copy path), single tile, no mask.
    B, C, H, W = 2, 4, 16, 16
    keys = jax.random.split(jax.random.PRNGKey(0), n_preds + 1)
    preds1 = [jax.random.normal(keys[i], (B, C, H, W), dtype=jnp.float32)
              for i in range(n_preds)]
    tgt1 = jax.random.normal(keys[-1], (B, C, H, W), dtype=jnp.float32)
    loss1 = jax.block_until_ready(intermediate_l1_loss(preds1, tgt1, gamma=gamma))
    ref1 = _reference(preds1, tgt1, gamma=gamma)
    assert jnp.allclose(loss1, ref1, rtol=1e-5, atol=1e-6), (loss1, ref1)

    # Case 2: ragged element count -> pad path, 2 tiles, masked partial last tile.
    B2, C2, H2, W2 = 2, 3, 20, 24
    keys2 = jax.random.split(jax.random.PRNGKey(1), n_preds + 1)
    preds2 = [jax.random.normal(keys2[i], (B2, C2, H2, W2), dtype=jnp.float32)
              for i in range(n_preds)]
    tgt2 = jax.random.normal(keys2[-1], (B2, C2, H2, W2), dtype=jnp.float32)
    loss2 = jax.block_until_ready(intermediate_l1_loss(preds2, tgt2, gamma=gamma))
    ref2 = _reference(preds2, tgt2, gamma=gamma)
    assert jnp.allclose(loss2, ref2, rtol=1e-5, atol=1e-6), (loss2, ref2)

    # Case 3: bf16 inputs, gamma=1 (all x1.0 multiplies skipped), forced small
    # tiles/chunks so the chunked fori_loop accumulation path is exercised.
    n3 = 4
    keys3 = jax.random.split(jax.random.PRNGKey(2), n3 + 1)
    preds3 = [jax.random.normal(keys3[i], (2, 4, 32, 128), dtype=jnp.bfloat16)
              for i in range(n3)]
    tgt3 = jax.random.normal(keys3[-1], (2, 4, 32, 128), dtype=jnp.bfloat16)
    loss3 = jax.block_until_ready(
        intermediate_l1_loss(preds3, tgt3, gamma=1.0,
                             max_tile_rows=64, chunk_rows=16))
    ref3 = _reference(preds3, tgt3, gamma=1.0)
    assert jnp.allclose(loss3, ref3, rtol=3e-3, atol=2e-3), (loss3, ref3)

    # Case 4: tiny input (< one (8,128) tile) -> padded single-tile path.
    keys4 = jax.random.split(jax.random.PRNGKey(3), 2)
    preds4 = [jax.random.normal(keys4[0], (1, 1, 8, 8), dtype=jnp.float32)]
    tgt4 = jax.random.normal(keys4[1], (1, 1, 8, 8), dtype=jnp.float32)
    loss4 = jax.block_until_ready(intermediate_l1_loss(preds4, tgt4, gamma=gamma))
    ref4 = _reference(preds4, tgt4, gamma=gamma)
    assert jnp.allclose(loss4, ref4, rtol=1e-5, atol=1e-6), (loss4, ref4)

    print("KERNEL_OK")
</pallas_src>

<mosaic_0001>
module attributes {stable_mosaic.version = 11 : i64} {
  func.func @_intermediate_l1_kernel(%arg0: i32, %arg1: memref<16x128xf32, #tpu.memory_space<vmem>>, %arg2: memref<16x128xf32, #tpu.memory_space<vmem>>, %arg3: memref<16x128xf32, #tpu.memory_space<vmem>>, %arg4: memref<16x128xf32, #tpu.memory_space<vmem>>, %arg5: memref<1x8x128xf32, #tpu.memory_space<vmem>>) attributes {dimension_semantics = [#tpu.dimension_semantics<parallel>], iteration_bounds = array<i64: 1>, scalar_prefetch = 0 : i64, scratch_operands = 0 : i64, tpu.core_type = #tpu.core_type<tc>, window_params = [{transform_indices = @transform_0, window_bounds = array<i64: 16, 128>}, {transform_indices = @transform_1, window_bounds = array<i64: 16, 128>}, {transform_indices = @transform_2, window_bounds = array<i64: 16, 128>}, {transform_indices = @transform_3, window_bounds = array<i64: 16, 128>}, {transform_indices = @transform_4, window_bounds = array<i64: 1, 8, 128>}]} {
    %c0 = arith.constant 0 : index
    %c0_0 = arith.constant 0 : index
    %0 = vector.load %arg4[%c0, %c0_0] : memref<16x128xf32, #tpu.memory_space<vmem>>, vector<16x128xf32>
    %c0_1 = arith.constant 0 : index
    %c0_2 = arith.constant 0 : index
    %1 = vector.load %arg1[%c0_1, %c0_2] : memref<16x128xf32, #tpu.memory_space<vmem>>, vector<16x128xf32>
    %2 = arith.subf %1, %0 : vector<16x128xf32>
    %3 = math.absf %2 : vector<16x128xf32>
    %cst = arith.constant 6.400000e-01 : f32
    %4 = vector.broadcast %cst : f32 to vector<16x128xf32>
    %5 = arith.mulf %4, %3 : vector<16x128xf32>
    %c0_3 = arith.constant 0 : index
    %c0_4 = arith.constant 0 : index
    %6 = vector.load %arg2[%c0_3, %c0_4] : memref<16x128xf32, #tpu.memory_space<vmem>>, vector<16x128xf32>
    %7 = arith.subf %6, %0 : vector<16x128xf32>
    %8 = math.absf %7 : vector<16x128xf32>
    %cst_5 = arith.constant 8.000000e-01 : f32
    %9 = vector.broadcast %cst_5 : f32 to vector<16x128xf32>
    %10 = arith.mulf %9, %8 : vector<16x128xf32>
    %11 = arith.addf %5, %10 : vector<16x128xf32>
    %c0_6 = arith.constant 0 : index
    %c0_7 = arith.constant 0 : index
    %12 = vector.load %arg3[%c0_6, %c0_7] : memref<16x128xf32, #tpu.memory_space<vmem>>, vector<16x128xf32>
    %13 = arith.subf %12, %0 : vector<16x128xf32>
    %14 = math.absf %13 : vector<16x128xf32>
    %15 = arith.addf %11, %14 : vector<16x128xf32>
    %16 = vector.shape_cast %15 : vector<16x128xf32> to vector<2x8x128xf32>
    %cst_8 = arith.constant dense<0.000000e+00> : vector<8x128xf32>
    %17 = vector.multi_reduction <add>, %16, %cst_8 [0] : vector<2x8x128xf32> to vector<8x128xf32>
    %18 = vector.shape_cast %17 : vector<8x128xf32> to vector<1x8x128xf32>
    %c0_9 = arith.constant 0 : index
    %c0_10 = arith.constant 0 : index
    %c0_11 = arith.constant 0 : index
    %19 = vector.load %arg5[%c0_9, %c0_10, %c0_11] : memref<1x8x128xf32, #tpu.memory_space<vmem>>, vector<1x8x128xf32>
    tpu.vector_store %arg5[%c0_9, %c0_10, %c0_11], %18 {strides = array<i32>} : memref<1x8x128xf32, #tpu.memory_space<vmem>>, vector<1x8x128xf32>,
    return
  }
  func.func @transform_0(%arg0: i32) -> (i32, i32) {
    %c0_i32 = arith.constant 0 : i32
    %c0_i32_0 = arith.constant 0 : i32
    return %arg0, %c0_i32 : i32, i32
  }
  func.func @transform_1(%arg0: i32) -> (i32, i32) {
    %c0_i32 = arith.constant 0 : i32
    %c0_i32_0 = arith.constant 0 : i32
    return %arg0, %c0_i32 : i32, i32
  }
  func.func @transform_2(%arg0: i32) -> (i32, i32) {
    %c0_i32 = arith.constant 0 : i32
    %c0_i32_0 = arith.constant 0 : i32
    return %arg0, %c0_i32 : i32, i32
  }
  func.func @transform_3(%arg0: i32) -> (i32, i32) {
    %c0_i32 = arith.constant 0 : i32
    %c0_i32_0 = arith.constant 0 : i32
    return %arg0, %c0_i32 : i32, i32
  }
  func.func @transform_4(%arg0: i32) -> (i32, i32, i32) {
    %c0_i32 = arith.constant 0 : i32
    %c0_i32_0 = arith.constant 0 : i32
    %c0_i32_1 = arith.constant 0 : i32
    return %arg0, %c0_i32, %c0_i32_0 : i32, i32, i32
  }
}

</mosaic_0001>

<llo_original>
// kernel: tpu_custom_call.1
$region0: #{tpu_custom_call.1}
  #allocation0 [shape = 'u32[]', space=smem, size = 0x4, offset = 0x4, fixed_abs, tag = 'smem constant byte address 0x4 - core index']
  #allocation1 [shape = 'u32[144,128]{1,0:T(1,128)}', space=vmem, size = 0x12000, scoped, tag = 'internal scratch']
  %s0 = inlined_call_operand.hbm [shape: f32[16,128], index: 0, kind: input, shape index: {}]
  %s1 = inlined_call_operand.hbm [shape: f32[16,128], index: 1, kind: input, shape index: {}]
  %s2 = inlined_call_operand.hbm [shape: f32[16,128], index: 2, kind: input, shape index: {}]
  %s3 = inlined_call_operand.hbm [shape: f32[16,128], index: 3, kind: input, shape index: {}]
  %s4 = inlined_call_operand.hbm [shape: f32[1,8,128], index: 4, kind: output, shape index: {}]
  %s5 = sld [smem:[#allocation0]]
  $region42: #{tpu_custom_call.1} parent=0
    _
  %s7 = ssub.s32 1, %s5
  %s8 = scalar_select 0, %s7, %s5
  $region1: #{tpu_custom_call.1} parent=0
    #allocation2 [shape = 'u8[8192]{0}', space=vmem, size = 0x2000, scoped, tag = 'input window, operand 0, single buffered']
    #allocation3 [shape = 's32[1]{0}', space=sflag, size = 0x4, scoped, tag = 'scoped memory for tpu_custom_call.1']
    #allocation4 [shape = 's32[1]{0}', space=sflag, size = 0x4, scoped, tag = 'scoped memory for tpu_custom_call.1']
    #allocation5 [shape = 'u8[8192]{0}', space=vmem, size = 0x2000, scoped, tag = 'input window, operand 1, single buffered']
    #allocation6 [shape = 's32[1]{0}', space=sflag, size = 0x4, scoped, tag = 'scoped memory for tpu_custom_call.1']
    #allocation7 [shape = 'u8[8192]{0}', space=vmem, size = 0x2000, scoped, tag = 'input window, operand 2, single buffered']
    #allocation8 [shape = 'u8[8192]{0}', space=vmem, size = 0x2000, scoped, tag = 'input window, operand 3, single buffered']
    #allocation9 [shape = 's32[1]{0}', space=sflag, size = 0x4, scoped, tag = 'scoped memory for tpu_custom_call.1']
    #allocation10 [shape = 'u8[4096]{0}', space=vmem, size = 0x1000, scoped, tag = 'output window, operand 0, single buffered']
    %9 = vsyncpa [#allocation3], 0
    %10 = vsyncpa [#allocation6], 0
    %11 = vsyncpa [#allocation9], 0
    %12 = vsyncpa [#allocation4], 0
    // Predicated region
    $region2: #{tpu_custom_call.1} parent=1 // pred_check
      _
    $region3: #{tpu_custom_call.1} parent=1 // pred_check_branch
      %14 = sbr.rel (0) target = $region5
    $region4: #{tpu_custom_call.1} parent=1 // pred_region
      %s16 = ssub.s32 256, 256
      %17 = vsyncadd [#allocation3], %s16
      %s18 = sshll.u32 [#allocation2], 4
      %s19 = int_to_ptr.vmem [resolvable:$true] %s18
      %24 = dma.hbm_to_vmem [thread:$0]  %s0, 256, %s19, [#allocation3], 128, 128, 8
    $region5: #{tpu_custom_call.1} parent=1 // pred_fallthru
      _
    // Predicated region
    $region6: #{tpu_custom_call.1} parent=1 // pred_check
      _
    $region7: #{tpu_custom_call.1} parent=1 // pred_check_branch
      %26 = sbr.rel (0) target = $region9
    $region8: #{tpu_custom_call.1} parent=1 // pred_region
      %s28 = ssub.s32 256, 256
      %29 = vsyncadd [#allocation6], %s28
      %s30 = sshll.u32 [#allocation5], 4
      %s31 = int_to_ptr.vmem [resolvable:$true] %s30
      %36 = dma.hbm_to_vmem [thread:$0]  %s1, 256, %s31, [#allocation6], 128, 128, 8
    $region9: #{tpu_custom_call.1} parent=1 // pred_fallthru
      _
    // Predicated region
    $region10: #{tpu_custom_call.1} parent=1 // pred_check
      _
    $region11: #{tpu_custom_call.1} parent=1 // pred_check_branch
      %38 = sbr.rel (0) target = $region13
    $region12: #{tpu_custom_call.1} parent=1 // pred_region
      %s40 = ssub.s32 256, 256
      %41 = vsyncadd [#allocation6], %s40
      %s42 = sshll.u32 [#allocation7], 4
      %s43 = int_to_ptr.vmem [resolvable:$true] %s42
      %48 = dma.hbm_to_vmem [thread:$0]  %s2, 256, %s43, [#allocation6], 128, 128, 8
    $region13: #{tpu_custom_call.1} parent=1 // pred_fallthru
      _
    // Predicated region
    $region14: #{tpu_custom_call.1} parent=1 // pred_check
      _
    $region15: #{tpu_custom_call.1} parent=1 // pred_check_branch
      %50 = sbr.rel (0) target = $region17
    $region16: #{tpu_custom_call.1} parent=1 // pred_region
      %s52 = ssub.s32 256, 256
      %53 = vsyncadd [#allocation9], %s52
      %s54 = sshll.u32 [#allocation8], 4
      %s55 = int_to_ptr.vmem [resolvable:$true] %s54
      %60 = dma.hbm_to_vmem [thread:$0]  %s3, 256, %s55, [#allocation9], 128, 128, 8
    $region17: #{tpu_custom_call.1} parent=1 // pred_fallthru
      _
    // Predicated region
    $region18: #{tpu_custom_call.1} parent=1 // pred_check
      _
    $region19: #{tpu_custom_call.1} parent=1 // pred_check_branch
      %62 = sbr.rel (0) target = $region21
    $region20: #{tpu_custom_call.1} parent=1 // pred_region
      %63 = dma.done [#allocation3], 256
    $region21: #{tpu_custom_call.1} parent=1 // pred_fallthru
      _
    // Predicated region
    $region22: #{tpu_custom_call.1} parent=1 // pred_check
      _
    $region23: #{tpu_custom_call.1} parent=1 // pred_check_branch
      %65 = sbr.rel (0) target = $region25
    $region24: #{tpu_custom_call.1} parent=1 // pred_region
      %66 = dma.done [#allocation6], 256
    $region25: #{tpu_custom_call.1} parent=1 // pred_fallthru
      _
    // Predicated region
    $region26: #{tpu_custom_call.1} parent=1 // pred_check
      _
    $region27: #{tpu_custom_call.1} parent=1 // pred_check_branch
      %68 = sbr.rel (0) target = $region29
    $region28: #{tpu_custom_call.1} parent=1 // pred_region
      %69 = dma.done [#allocation6], 256
    $region29: #{tpu_custom_call.1} parent=1 // pred_fallthru
      _
    // Predicated region
    $region30: #{tpu_custom_call.1} parent=1 // pred_check
      _
    $region31: #{tpu_custom_call.1} parent=1 // pred_check_branch
      %71 = sbr.rel (0) target = $region33
    $region32: #{tpu_custom_call.1} parent=1 // pred_region
      %72 = dma.done [#allocation9], 256
    $region33: #{tpu_custom_call.1} parent=1 // pred_fallthru
      _
    %v73 = vld [vmem:[#allocation8] sm:$0xff]
    %v74 = vld [vmem:[#allocation8 + $0x8] sm:$0xff]
    %v75 = vld [vmem:[#allocation2] sm:$0xff]
    %v76 = vld [vmem:[#allocation2 + $0x8] sm:$0xff]
    %v77 = vsub.f32 %v75, %v73
    %v78 = vsub.f32 %v76, %v74
    %v79 = vand.u32 2147483647, %v77
    %v80 = vand.u32 2147483647, %v78
    %v81 = vmul.f32 %v79, 0.64
    %v82 = vmul.f32 %v80, 0.64
    %v83 = vld [vmem:[#allocation5] sm:$0xff]
    %v84 = vld [vmem:[#allocation5 + $0x8] sm:$0xff]
    %v85 = vsub.f32 %v83, %v73
    %v86 = vsub.f32 %v84, %v74
    %v87 = vand.u32 2147483647, %v85
    %v88 = vand.u32 2147483647, %v86
    %v89 = vmul.f32 %v87, 0.8
    %v90 = vmul.f32 %v88, 0.8
    %v91 = vadd.f32 %v81, %v89
    %v92 = vadd.f32 %v82, %v90
    %v93 = vld [vmem:[#allocation7] sm:$0xff]
    %v94 = vld [vmem:[#allocation7 + $0x8] sm:$0xff]
    %v95 = vsub.f32 %v93, %v73
    %v96 = vsub.f32 %v94, %v74
    %v97 = vand.u32 2147483647, %v95
    %v98 = vand.u32 2147483647, %v96
    %v99 = vadd.f32 %v91, %v97
    %v100 = vadd.f32 %v92, %v98
    %v101 = vadd.f32 %v99, %v100
    %102 = vst [vmem:[#allocation10] sm:$0xff] %v101
    // Predicated region
    $region34: #{tpu_custom_call.1} parent=1 // pred_check
      _
    $region35: #{tpu_custom_call.1} parent=1 // pred_check_branch
      %104 = sbr.rel (0) target = $region37
    $region36: #{tpu_custom_call.1} parent=1 // pred_region
      %s106 = ssub.s32 128, 128
      %107 = vsyncadd [#allocation4], %s106
      %s109 = sshll.u32 [#allocation10], 4
      %s110 = int_to_ptr.vmem [resolvable:$true] %s109
      %112 = dma.vmem_to_hbm [thread:$0]  %s110, 128, %s4, [#allocation4]
    $region37: #{tpu_custom_call.1} parent=1 // pred_fallthru
      _
    // Predicated region
    $region38: #{tpu_custom_call.1} parent=1 // pred_check
      _
    $region39: #{tpu_custom_call.1} parent=1 // pred_check_branch
      %114 = sbr.rel (0) target = $region41
    $region40: #{tpu_custom_call.1} parent=1 // pred_region
      %115 = dma.done [#allocation4], 128
    $region41: #{tpu_custom_call.1} parent=1 // pred_fallthru
      _
    %116 = vsyncpa [#allocation3], 1
    %117 = vsyncpa [#allocation6], 1
    %118 = vsyncpa [#allocation9], 1
    %119 = vsyncpa [#allocation4], 1

</llo_original>
